<compile_context>
chip_gen: v6e
topology: v6e:2x2x1
jax: 0.10.0
libtpu: 0.0.40
codegen_flags: <defaults>
</compile_context>

<pallas_src>
import jax
import jax.numpy as jnp
from jax.experimental import pallas as pl
from jax.experimental.pallas import tpu as pltpu


def _round_up(n, m):
    return ((n + m - 1) // m) * m


def _make_mlp_kernel(D, H1, H2, H3, w_offs, b_offs):
    ow1, ow2, ow3, ow4 = w_offs
    ob1, ob2, ob3, ob4 = b_offs

    def kernel(x_ref, w_ref, b_ref, o_ref):
        # x_ref: [tb, D] f32 block in the caller's batch-major layout.
        # Transpose once to feature-major (batch on the 128-lane axis).
        xt = x_ref[...].T                                      # [D, tb] f32

        # F.normalize(x, dim=1): x * rsqrt(max(||x||^2, 1e-24))
        #                      == x / max(||x||, 1e-12).  Kept in f32.
        sq = jnp.sum(xt * xt, axis=0, keepdims=True)           # [1, tb]
        xn = (xt * jax.lax.rsqrt(jnp.maximum(sq, 1e-24))).astype(jnp.bfloat16)

        # Static slices into the packed slabs (bf16 weights, f32 biases).
        w1 = w_ref[ow1:ow1 + H1, 0:D]
        w2 = w_ref[ow2:ow2 + H2, 0:H1]
        w3 = w_ref[ow3:ow3 + H3, 0:H2]
        w4 = w_ref[ow4:ow4 + 1, 0:H3]
        b1 = b_ref[ob1:ob1 + H1, :]
        b2 = b_ref[ob2:ob2 + H2, :]
        b3 = b_ref[ob3:ob3 + H3, :]
        b4 = b_ref[ob4:ob4 + 1, :]

        # fc1..fc3 -> relu.  bf16 MXU matmuls, f32 accumulation/bias/ReLU.
        # TODO(synk): training-mode dropout (masking + 1/(1-p) scaling) is not
        # implemented; this matches eval() semantics (dropout = identity).
        h = jnp.dot(w1, xn, preferred_element_type=jnp.float32) + b1
        h = jnp.maximum(h, 0.0).astype(jnp.bfloat16)
        h = jnp.dot(w2, h, preferred_element_type=jnp.float32) + b2
        h = jnp.maximum(h, 0.0).astype(jnp.bfloat16)
        h = jnp.dot(w3, h, preferred_element_type=jnp.float32) + b3
        h = jnp.maximum(h, 0.0).astype(jnp.bfloat16)

        # fc4 (no activation in forward).  [1, tb] -> lane-dense store.
        out = jnp.dot(w4, h, preferred_element_type=jnp.float32) + b4
        o_ref[...] = out.astype(o_ref.dtype)

    return kernel


def _pack_params(params):
    """Pack the 4 weights (bf16) and 4 biases (f32) into two slabs.

    Row offsets are 8-aligned so static slices stay on sublane boundaries.
    """
    ws = [params["w1"], params["w2"], params["w3"], params["w4"]]
    bs = [params["b1"], params["b2"], params["b3"], params["b4"]]

    max_in = max(int(w.shape[1]) for w in ws)
    w_offs, rows = [], 0
    for w in ws:
        rows = _round_up(rows, 8)
        w_offs.append(rows)
        rows += int(w.shape[0])
    wslab = jnp.zeros((_round_up(rows, 8), max_in), jnp.bfloat16)
    for off, w in zip(w_offs, ws):
        wslab = wslab.at[off:off + w.shape[0], 0:w.shape[1]].set(
            w.astype(jnp.bfloat16))

    b_offs, rows = [], 0
    for b in bs:
        rows = _round_up(rows, 8)
        b_offs.append(rows)
        rows += int(b.shape[0])
    bslab = jnp.zeros((_round_up(rows, 8), 1), jnp.float32)
    for off, b in zip(b_offs, bs):
        bslab = bslab.at[off:off + b.shape[0], :].set(
            b.reshape(-1, 1).astype(jnp.float32))

    return wslab, bslab, tuple(w_offs), tuple(b_offs)


def _choose_tb(B, tb_req):
    """128-aligned batch tile, sized for step-overhead amortization."""
    tb = _round_up(max(1, min(tb_req, B)), 128)
    # Keep >= 2 grid steps whenever the batch allows it so v7x's two
    # TensorCores both get work ("parallel" grid axis).  On v5e/v6e the grid
    # is a sequential loop, so the extra step is a negligible overhead.
    if B > 128 and pl.cdiv(B, tb) < 2:
        tb = _round_up(pl.cdiv(B, 2), 128)
    return tb


def mlp_classifier_forward(x, params, *, tb=8192):
    """x: [B, input_size] float32.  params: PyTorch-layout W [out,in], b [out,1]."""
    B, D = x.shape
    H1 = int(params["w1"].shape[0])
    H2 = int(params["w2"].shape[0])
    H3 = int(params["w3"].shape[0])

    tb = _choose_tb(B, tb)
    n_tiles = pl.cdiv(B, tb)
    b_pad = n_tiles * tb

    xk = x.astype(jnp.float32)
    if b_pad != B:
        xk = jnp.pad(xk, ((0, b_pad - B), (0, 0)))     # zero rows -> harmless

    wslab, bslab, w_offs, b_offs = _pack_params(params)
    kernel = _make_mlp_kernel(D, H1, H2, H3, w_offs, b_offs)

    out_row = pl.pallas_call(
        kernel,
        out_shape=jax.ShapeDtypeStruct((1, b_pad), jnp.float32),
        grid_spec=pltpu.PrefetchScalarGridSpec(
            num_scalar_prefetch=0,
            grid=(n_tiles,),
            in_specs=[
                pl.BlockSpec((tb, D), lambda i: (i, 0)),        # x tile
                pl.BlockSpec(wslab.shape, lambda i: (0, 0)),    # weights slab
                pl.BlockSpec(bslab.shape, lambda i: (0, 0)),    # bias slab
            ],
            out_specs=pl.BlockSpec((1, tb), lambda i: (0, i)),
        ),
        compiler_params=pltpu.CompilerParams(
            dimension_semantics=("parallel",),
            vmem_limit_bytes=32 * 1024 * 1024),
    )(xk, wslab, bslab)

    return out_row[0, :B][:, None]                      # back to [B, 1]


def init_linear_params(key, in_features, out_features):
    """PyTorch-style init U(-1/sqrt(fan_in), 1/sqrt(fan_in)); W [out,in], b [out,1]."""
    kw, kb = jax.random.split(key)
    bound = 1.0 / (in_features ** 0.5)
    w = jax.random.uniform(kw, (out_features, in_features), jnp.float32,
                           minval=-bound, maxval=bound)
    b = jax.random.uniform(kb, (out_features, 1), jnp.float32,
                           minval=-bound, maxval=bound)
    return w, b


def reference_forward(x, params):
    """Pure-JAX f32 reference (PyTorch layout: W [out,in], b [out,1])."""
    norm = jnp.sqrt(jnp.sum(x * x, axis=1, keepdims=True))
    h = x / jnp.maximum(norm, 1e-12)
    dot = lambda a, w: jnp.dot(a, w.T, precision=jax.lax.Precision.HIGHEST)
    h = jnp.maximum(dot(h, params["w1"]) + params["b1"].T, 0.0)
    h = jnp.maximum(dot(h, params["w2"]) + params["b2"].T, 0.0)
    h = jnp.maximum(dot(h, params["w3"]) + params["b3"].T, 0.0)
    return dot(h, params["w4"]) + params["b4"].T


if __name__ == "__main__":
    input_size, hidden1, hidden2, hidden3 = 32, 64, 32, 16

    key = jax.random.PRNGKey(0)
    kx, k1, k2, k3, k4 = jax.random.split(key, 5)

    w1, b1 = init_linear_params(k1, input_size, hidden1)
    w2, b2 = init_linear_params(k2, hidden1, hidden2)
    w3, b3 = init_linear_params(k3, hidden2, hidden3)
    w4, b4 = init_linear_params(k4, hidden3, 1)
    params = dict(w1=w1, b1=b1, w2=w2, b2=b2, w3=w3, b3=b3, w4=w4, b4=b4)

    # Two cases: a 128-aligned batch and an odd batch exercising the padding
    # path.  Both exercise the >=2-grid-step (dual-TC) tile clamp.
    for batch in (512, 300):
        x = jax.random.normal(jax.random.fold_in(kx, batch),
                              (batch, input_size), jnp.float32)
        out = jax.block_until_ready(mlp_classifier_forward(x, params))

        ref = reference_forward(x, params)
        assert out.shape == (batch, 1), out.shape
        err = float(jnp.max(jnp.abs(out - ref)))
        # bf16 MXU matmuls with f32 accumulation vs. pure-f32 reference.
        assert jnp.allclose(out, ref, atol=2e-2, rtol=2e-2), err

    print("KERNEL_OK")
</pallas_src>

<mosaic_0001>
module attributes {stable_mosaic.version = 11 : i64} {
  func.func @kernel(%arg0: i32, %arg1: memref<256x32xf32, #tpu.memory_space<vmem>>, %arg2: memref<120x64xbf16, #tpu.memory_space<vmem>>, %arg3: memref<120x1xf32, #tpu.memory_space<vmem>>, %arg4: memref<1x256xf32, #tpu.memory_space<vmem>>) attributes {dimension_semantics = [#tpu.dimension_semantics<parallel>], iteration_bounds = array<i64: 2>, scalar_prefetch = 0 : i64, scratch_operands = 0 : i64, tpu.core_type = #tpu.core_type<tc>, window_params = [{transform_indices = @transform_0, window_bounds = array<i64: 256, 32>}, {pipeline_mode = #tpu.pipeline_mode<synchronous>, transform_indices = @transform_1, window_bounds = array<i64: 120, 64>}, {pipeline_mode = #tpu.pipeline_mode<synchronous>, transform_indices = @transform_2, window_bounds = array<i64: 120, 1>}, {transform_indices = @transform_3, window_bounds = array<i64: 1, 256>}]} {
    %c0 = arith.constant 0 : index
    %c0_0 = arith.constant 0 : index
    %0 = vector.load %arg1[%c0, %c0_0] : memref<256x32xf32, #tpu.memory_space<vmem>>, vector<256x32xf32>
    %1 = tpu.transpose %0, [1, 0] : vector<256x32xf32> -> vector<32x256xf32>
    %2 = arith.mulf %1, %1 : vector<32x256xf32>
    %cst = arith.constant dense<0.000000e+00> : vector<256xf32>
    %3 = vector.multi_reduction <add>, %2, %cst [0] : vector<32x256xf32> to vector<256xf32>
    %4 = vector.shape_cast %3 : vector<256xf32> to vector<1x256xf32>
    %cst_1 = arith.constant 1.000000e-24 : f32
    %5 = vector.broadcast %cst_1 : f32 to vector<1x256xf32>
    %6 = arith.maximumf %4, %5 : vector<1x256xf32>
    %7 = math.rsqrt %6 : vector<1x256xf32>
    %8 = vector.broadcast %7 : vector<1x256xf32> to vector<32x256xf32>
    %9 = arith.mulf %1, %8 : vector<32x256xf32>
    %10 = arith.truncf %9 : vector<32x256xf32> to vector<32x256xbf16>
    %c0_2 = arith.constant 0 : index
    %c0_3 = arith.constant 0 : index
    %11 = vector.load %arg2[%c0_2, %c0_3] : memref<120x64xbf16, #tpu.memory_space<vmem>>, vector<64x32xbf16>
    %c64 = arith.constant 64 : index
    %c0_4 = arith.constant 0 : index
    %12 = vector.load %arg2[%c64, %c0_4] : memref<120x64xbf16, #tpu.memory_space<vmem>>, vector<32x64xbf16>
    %c96 = arith.constant 96 : index
    %c0_5 = arith.constant 0 : index
    %13 = vector.load %arg2[%c96, %c0_5] : memref<120x64xbf16, #tpu.memory_space<vmem>>, vector<16x32xbf16>
    %c112 = arith.constant 112 : index
    %c0_6 = arith.constant 0 : index
    %14 = vector.load %arg2[%c112, %c0_6] : memref<120x64xbf16, #tpu.memory_space<vmem>>, vector<1x16xbf16>
    %c0_7 = arith.constant 0 : index
    %c0_8 = arith.constant 0 : index
    %15 = vector.load %arg3[%c0_7, %c0_8] : memref<120x1xf32, #tpu.memory_space<vmem>>, vector<64x1xf32>
    %c64_9 = arith.constant 64 : index
    %c0_10 = arith.constant 0 : index
    %16 = vector.load %arg3[%c64_9, %c0_10] : memref<120x1xf32, #tpu.memory_space<vmem>>, vector<32x1xf32>
    %c96_11 = arith.constant 96 : index
    %c0_12 = arith.constant 0 : index
    %17 = vector.load %arg3[%c96_11, %c0_12] : memref<120x1xf32, #tpu.memory_space<vmem>>, vector<16x1xf32>
    %c112_13 = arith.constant 112 : index
    %c0_14 = arith.constant 0 : index
    %18 = vector.load %arg3[%c112_13, %c0_14] : memref<120x1xf32, #tpu.memory_space<vmem>>, vector<1x1xf32>
    %cst_15 = arith.constant dense<0.000000e+00> : vector<64x256xf32>
    %19 = tpu.matmul %11, %10, %cst_15 {dimension_numbers = #tpu.dot_dimension_numbers<[1], [0], [0], [1], [0, 0, 1, 1], [], []>} : vector<64x32xbf16>, vector<32x256xbf16>, vector<64x256xf32> -> vector<64x256xf32>
    %20 = vector.broadcast %15 : vector<64x1xf32> to vector<64x256xf32>
    %21 = arith.addf %19, %20 : vector<64x256xf32>
    %cst_16 = arith.constant 0.000000e+00 : f32
    %22 = vector.broadcast %cst_16 : f32 to vector<64x256xf32>
    %23 = arith.maximumf %21, %22 : vector<64x256xf32>
    %24 = arith.truncf %23 : vector<64x256xf32> to vector<64x256xbf16>
    %cst_17 = arith.constant dense<0.000000e+00> : vector<32x256xf32>
    %25 = tpu.matmul %12, %24, %cst_17 {dimension_numbers = #tpu.dot_dimension_numbers<[1], [0], [0], [1], [0, 0, 1, 1], [], []>} : vector<32x64xbf16>, vector<64x256xbf16>, vector<32x256xf32> -> vector<32x256xf32>
    %26 = vector.broadcast %16 : vector<32x1xf32> to vector<32x256xf32>
    %27 = arith.addf %25, %26 : vector<32x256xf32>
    %cst_18 = arith.constant 0.000000e+00 : f32
    %28 = vector.broadcast %cst_18 : f32 to vector<32x256xf32>
    %29 = arith.maximumf %27, %28 : vector<32x256xf32>
    %30 = arith.truncf %29 : vector<32x256xf32> to vector<32x256xbf16>
    %cst_19 = arith.constant dense<0.000000e+00> : vector<16x256xf32>
    %31 = tpu.matmul %13, %30, %cst_19 {dimension_numbers = #tpu.dot_dimension_numbers<[1], [0], [0], [1], [0, 0, 1, 1], [], []>} : vector<16x32xbf16>, vector<32x256xbf16>, vector<16x256xf32> -> vector<16x256xf32>
    %32 = vector.broadcast %17 : vector<16x1xf32> to vector<16x256xf32>
    %33 = arith.addf %31, %32 : vector<16x256xf32>
    %cst_20 = arith.constant 0.000000e+00 : f32
    %34 = vector.broadcast %cst_20 : f32 to vector<16x256xf32>
    %35 = arith.maximumf %33, %34 : vector<16x256xf32>
    %36 = arith.truncf %35 : vector<16x256xf32> to vector<16x256xbf16>
    %cst_21 = arith.constant dense<0.000000e+00> : vector<1x256xf32>
    %37 = tpu.matmul %14, %36, %cst_21 {dimension_numbers = #tpu.dot_dimension_numbers<[1], [0], [0], [1], [0, 0, 1, 1], [], []>} : vector<1x16xbf16>, vector<16x256xbf16>, vector<1x256xf32> -> vector<1x256xf32>
    %38 = vector.broadcast %18 : vector<1x1xf32> to vector<1x256xf32>
    %39 = arith.addf %37, %38 : vector<1x256xf32>
    %c0_22 = arith.constant 0 : index
    %c0_23 = arith.constant 0 : index
    %40 = vector.load %arg4[%c0_22, %c0_23] : memref<1x256xf32, #tpu.memory_space<vmem>>, vector<1x256xf32>
    tpu.vector_store %arg4[%c0_22, %c0_23], %39 {strides = array<i32>} : memref<1x256xf32, #tpu.memory_space<vmem>>, vector<1x256xf32>,
    return
  }
  func.func @transform_0(%arg0: i32) -> (i32, i32) {
    %c0_i32 = arith.constant 0 : i32
    %c0_i32_0 = arith.constant 0 : i32
    return %arg0, %c0_i32 : i32, i32
  }
  func.func @transform_1(%arg0: i32) -> (i32, i32) {
    %c0_i32 = arith.constant 0 : i32
    %c0_i32_0 = arith.constant 0 : i32
    %c0_i32_1 = arith.constant 0 : i32
    return %c0_i32, %c0_i32_0 : i32, i32
  }
  func.func @transform_2(%arg0: i32) -> (i32, i32) {
    %c0_i32 = arith.constant 0 : i32
    %c0_i32_0 = arith.constant 0 : i32
    %c0_i32_1 = arith.constant 0 : i32
    return %c0_i32, %c0_i32_0 : i32, i32
  }
  func.func @transform_3(%arg0: i32) -> (i32, i32) {
    %c0_i32 = arith.constant 0 : i32
    %c0_i32_0 = arith.constant 0 : i32
    return %c0_i32, %arg0 : i32, i32
  }
}

</mosaic_0001>

<llo_original>
// kernel: tpu_custom_call.1
$region0: #{tpu_custom_call.1}
  #allocation0 [shape = 'u32[]', space=smem, size = 0x4, offset = 0x4, fixed_abs, tag = 'smem constant byte address 0x4 - core index']
  #allocation1 [shape = 'u32[144,128]{1,0:T(1,128)}', space=vmem, size = 0x12000, scoped, tag = 'internal scratch']
  %s0 = inlined_call_operand.vmem [shape: f32[512,32], index: 0, kind: input, shape index: {}]
  %s1 = inlined_call_operand.vmem [shape: bf16[120,64], index: 1, kind: input, shape index: {}]
  %s2 = inlined_call_operand.vmem [shape: f32[120,1], index: 2, kind: input, shape index: {}]
  %s3 = inlined_call_operand.hbm [shape: f32[1,512], index: 3, kind: output, shape index: {}]
  %s4 = sld [smem:[#allocation0]]
  $region45: #{tpu_custom_call.1} parent=0
    _
  %s6 = ssub.s32 1, %s4
  %s7 = scalar_select 0, %s6, %s4
  $region1: #{tpu_custom_call.1} parent=0
    #allocation2 [shape = 'u8[2048]{0}', space=vmem, size = 0x800, scoped, tag = 'output window, operand 0']
    #allocation3 [shape = 's32[2]{0}', space=sflag, size = 0x8, scoped, tag = 'scoped memory for tpu_custom_call.1']
    %8 = vsyncpa [#allocation3], 0
    %s9 = scalar_lea.sflag [#allocation3], 1
    %10 = vsyncpa %s9, 0
    loop: start=0, step=1, limit=4
    $region2: #{tpu_custom_call.1} parent=1 // loop_pre_header
      _
    $region3: #{tpu_custom_call.1} parent=1 // loop_header
      %s12 = sphi 0, %s16
      %p13 = scmp.ge.s32.totalorder %s12, 4
      %s22 = sphi 0, %s24
      %s25 = sphi 0, %s22
      %s26 = sphi 0, %s25
      %s42 = sphi 0, %s26
      %s46 = sphi 0, %s46
      %s48 = sphi 0, %s46
      %s49 = sphi 0, %s48
      %s63 = sphi 0, %s49
      %s67 = sphi 0, %s67
      %s69 = sphi 0, %s67
      %s70 = sphi 0, %s69
      %s84 = sphi 0, %s70
      %s90 = sphi 0, %s92
      %s93 = sphi 0, %s90
      %s94 = sphi 0, %s93
      %s110 = sphi 0, %s94
    $region4: #{tpu_custom_call.1} parent=1 // loop_header_branch
      %15 = sbr.rel (%p13) target = $region8
    $region5: #{tpu_custom_call.1} parent=1 // loop_body
      %s17 = ssub.s32 %s12, 1
      %s18 = ssub.s32 %s12, 2
      %s19 = sadd.s32 %s12, 1
      %s20 = ssub.s32 %s12, %s19
      %p21 = scmp.eq.s32.totalorder %s20, 0
      %s23 = sadd.s32 %s22, 1
      %s24 = scalar_select %p21, %s22, %s23
      %p27 = pneg %p21
      %p28 = scmp.eq.s32.totalorder %s12, 1
      %p29 = por %p27, %p28
      %p30 = scmp.ne.s32.totalorder %s22, %s25
      %p31 = scmp.eq.s32.totalorder %s12, 0
      %p32 = por %p30, %p31
      %p33 = scmp.ne.s32.totalorder %s22, %s25
      %p34 = scmp.eq.s32.totalorder %s17, 1
      %p35 = por %p33, %p34
      %p36 = scmp.ne.s32.totalorder %s25, %s26
      %p37 = scmp.eq.s32.totalorder %s17, 0
      %p38 = por %p36, %p37
      %p39 = scmp.ne.s32.totalorder %s25, %s26
      %p40 = scmp.eq.s32.totalorder %s18, 1
      %p41 = por %p39, %p40
      %p43 = scmp.ne.s32.totalorder %s26, %s42
      %p44 = scmp.eq.s32.totalorder %s18, 0
      %p45 = por %p43, %p44
      %s47 = sadd.s32 %s46, 1
      %p50 = scmp.eq.s32.totalorder %s12, 1
      %p51 = scmp.ne.s32.totalorder %s46, %s48
      %p52 = scmp.eq.s32.totalorder %s12, 0
      %p53 = por %p51, %p52
      %p54 = scmp.ne.s32.totalorder %s46, %s48
      %p55 = scmp.eq.s32.totalorder %s17, 1
      %p56 = por %p54, %p55
      %p57 = scmp.ne.s32.totalorder %s48, %s49
      %p58 = scmp.eq.s32.totalorder %s17, 0
      %p59 = por %p57, %p58
      %p60 = scmp.ne.s32.totalorder %s48, %s49
      %p61 = scmp.eq.s32.totalorder %s18, 1
      %p62 = por %p60, %p61
      %p64 = scmp.ne.s32.totalorder %s49, %s63
      %p65 = scmp.eq.s32.totalorder %s18, 0
      %p66 = por %p64, %p65
      %s68 = sadd.s32 %s67, 1
      %p71 = scmp.eq.s32.totalorder %s12, 1
      %p72 = scmp.ne.s32.totalorder %s67, %s69
      %p73 = scmp.eq.s32.totalorder %s12, 0
      %p74 = por %p72, %p73
      %p75 = scmp.ne.s32.totalorder %s67, %s69
      %p76 = scmp.eq.s32.totalorder %s17, 1
      %p77 = por %p75, %p76
      %p78 = scmp.ne.s32.totalorder %s69, %s70
      %p79 = scmp.eq.s32.totalorder %s17, 0
      %p80 = por %p78, %p79
      %p81 = scmp.ne.s32.totalorder %s69, %s70
      %p82 = scmp.eq.s32.totalorder %s18, 1
      %p83 = por %p81, %p82
      %p85 = scmp.ne.s32.totalorder %s70, %s84
      %p86 = scmp.eq.s32.totalorder %s18, 0
      %p87 = por %p85, %p86
      %s88 = ssub.s32 %s12, %s19
      %p89 = scmp.eq.s32.totalorder %s88, 0
      %s91 = sadd.s32 %s90, 1
      %s92 = scalar_select %p89, %s90, %s91
      %p95 = pneg %p89
      %p96 = scmp.eq.s32.totalorder %s12, 1
      %p97 = por %p95, %p96
      %p98 = scmp.ne.s32.totalorder %s90, %s93
      %p99 = scmp.eq.s32.totalorder %s12, 0
      %p100 = por %p98, %p99
      %p101 = scmp.ne.s32.totalorder %s90, %s93
      %p102 = scmp.eq.s32.totalorder %s17, 1
      %p103 = por %p101, %p102
      %p104 = scmp.ne.s32.totalorder %s93, %s94
      %p105 = scmp.eq.s32.totalorder %s17, 0
      %p106 = por %p104, %p105
      %p107 = scmp.ne.s32.totalorder %s93, %s94
      %p108 = scmp.eq.s32.totalorder %s18, 1
      %p109 = por %p107, %p108
      %p111 = scmp.ne.s32.totalorder %s94, %s110
      %p112 = scmp.eq.s32.totalorder %s18, 0
      %p113 = por %p111, %p112
      %p114 = scmp.le.s32.totalorder 1, %s12
      %p115 = scmp.lt.s32.totalorder %s12, 3
      %p116 = pnand %p114, %p115
      %p117 = pneg %p116
      // Predicated region
      $region9: #{tpu_custom_call.1} parent=5 // pred_check
        _
      $region10: #{tpu_custom_call.1} parent=5 // pred_check_branch
        %119 = sbr.rel (%p116) target = $region12
      $region11: #{tpu_custom_call.1} parent=5 // pred_region
        %s120 = ssub.s32 %s12, 1
        // Predicated region
        $region13: #{tpu_custom_call.1} parent=11 // pred_check
          %p121 = pneg %p59
        $region14: #{tpu_custom_call.1} parent=11 // pred_check_branch
          %123 = sbr.rel (%p121) target = $region16
        $region15: #{tpu_custom_call.1} parent=11 // pred_region
          _
        $region16: #{tpu_custom_call.1} parent=11 // pred_fallthru
          _
        // Predicated region
        $region17: #{tpu_custom_call.1} parent=11 // pred_check
          %p124 = pneg %p80
        $region18: #{tpu_custom_call.1} parent=11 // pred_check_branch
          %126 = sbr.rel (%p124) target = $region20
        $region19: #{tpu_custom_call.1} parent=11 // pred_region
          _
        $region20: #{tpu_custom_call.1} parent=11 // pred_fallthru
          _
      $region12: #{tpu_custom_call.1} parent=5 // pred_fallthru
        _
      %p127 = scmp.lt.s32.totalorder %s12, 2
      // Predicated region
      $region21: #{tpu_custom_call.1} parent=5 // pred_check
        %p128 = pneg %p127
      $region22: #{tpu_custom_call.1} parent=5 // pred_check_branch
        %130 = sbr.rel (%p128) target = $region24
      $region23: #{tpu_custom_call.1} parent=5 // pred_region
        // Predicated region
        $region25: #{tpu_custom_call.1} parent=23 // pred_check
          %p131 = pneg %p32
        $region26: #{tpu_custom_call.1} parent=23 // pred_check_branch
          %133 = sbr.rel (%p131) target = $region28
        $region27: #{tpu_custom_call.1} parent=23 // pred_region
          %s134 = smul.u32 32, %s12
          %p135 = scmp.lt.s32.totalorder %s134, 63
          %s136 = scalar_select %p135, %s134, 63
          %s137 = smul.addr %s136, 8
          %s138 = scalar_lea.vmem %s0, %s137
          %s139 = smul.u32 32, %s12
        $region28: #{tpu_custom_call.1} parent=23 // pred_fallthru
          _
      $region24: #{tpu_custom_call.1} parent=5 // pred_fallthru
        _
      %p140 = scmp.le.s32.totalorder 1, %s12
      %p141 = scmp.lt.s32.totalorder %s12, 3
      %p142 = pnand %p140, %p141
      %p143 = pneg %p142
      // Predicated region
      $region29: #{tpu_custom_call.1} parent=5 // pred_check
        _
      $region30: #{tpu_custom_call.1} parent=5 // pred_check_branch
        %145 = sbr.rel (%p142) target = $region32
      $region31: #{tpu_custom_call.1} parent=5 // pred_region
        %s146 = ssub.s32 %s12, 1
        %s147 = smul.u32 32, %s17
        %p148 = scmp.lt.s32.totalorder %s147, 63
        %s149 = scalar_select %p148, %s147, 63
        %s150 = smul.addr %s149, 8
        %s151 = scalar_lea.vmem %s0, %s150
        %p152 = pneg %p38
        %p153 = pneg %p35
        %p154 = pneg %p59
        %p155 = pneg %p56
        %p156 = pneg %p80
        %p157 = pneg %p77
        %p158 = pneg %p106
        %p159 = pneg %p103
        %s160 = sand.u32 %s93, 1
        %s161 = scalar_lea.sflag [#allocation3], %s160
        %s162 = sand.u32 %s93, 1
        %s163 = smul.addr %s162, 2
        %s164 = scalar_lea.vmem [#allocation2], %s163
        %s165 = smul.u32 32, %s17
        %p166 = scmp.lt.s32.totalorder %s165, 63
        %s167 = scalar_select %p166, %s165, 63
        %s168 = smul.addr %s167, 8
        %s169 = scalar_lea.vmem %s0, %s168
        %s170 = smul.u32 32, %s17
        %s171 = smul.u32 2, %s17
        %v173 = vld [vmem:[%s169] sm:$0xff]
        %v174 = vld [vmem:[%s169 + $0x8] sm:$0xff]
        %v175 = vld [vmem:[%s169 + $0x10] sm:$0xff]
        %v176 = vld [vmem:[%s169 + $0x18] sm:$0xff]
        %v177 = vld [vmem:[%s169 + $0x20] sm:$0xff]
        %v178 = vld [vmem:[%s169 + $0x28] sm:$0xff]
        %v179 = vld [vmem:[%s169 + $0x30] sm:$0xff]
        %v180 = vld [vmem:[%s169 + $0x38] sm:$0xff]
        %v181 = vld [vmem:[%s169 + $0x40] sm:$0xff]
        %v182 = vld [vmem:[%s169 + $0x48] sm:$0xff]
        %v183 = vld [vmem:[%s169 + $0x50] sm:$0xff]
        %v184 = vld [vmem:[%s169 + $0x58] sm:$0xff]
        %v185 = vld [vmem:[%s169 + $0x60] sm:$0xff]
        %v186 = vld [vmem:[%s169 + $0x68] sm:$0xff]
        %v187 = vld [vmem:[%s169 + $0x70] sm:$0xff]
        %v188 = vld [vmem:[%s169 + $0x78] sm:$0xff]
        %v189 = vld [vmem:[%s169 + $0x80] sm:$0xff]
        %v190 = vld [vmem:[%s169 + $0x88] sm:$0xff]
        %v191 = vld [vmem:[%s169 + $0x90] sm:$0xff]
        %v192 = vld [vmem:[%s169 + $0x98] sm:$0xff]
        %v193 = vld [vmem:[%s169 + $0xa0] sm:$0xff]
        %v194 = vld [vmem:[%s169 + $0xa8] sm:$0xff]
        %v195 = vld [vmem:[%s169 + $0xb0] sm:$0xff]
        %v196 = vld [vmem:[%s169 + $0xb8] sm:$0xff]
        %v197 = vld [vmem:[%s169 + $0xc0] sm:$0xff]
        %v198 = vld [vmem:[%s169 + $0xc8] sm:$0xff]
        %v199 = vld [vmem:[%s169 + $0xd0] sm:$0xff]
        %v200 = vld [vmem:[%s169 + $0xd8] sm:$0xff]
        %v201 = vld [vmem:[%s169 + $0xe0] sm:$0xff]
        %v202 = vld [vmem:[%s169 + $0xe8] sm:$0xff]
        %v203 = vld [vmem:[%s169 + $0xf0] sm:$0xff]
        %v204 = vld [vmem:[%s169 + $0xf8] sm:$0xff]
        %205 = vxpose.xlu0.b32.start [1/16] %v173, 128
        %206 = vxpose.xlu0.b32.cont [2/16] %v174, 128
        %207 = vxpose.xlu0.b32.cont [3/16] %v175, 128
        %208 = vxpose.xlu0.b32.cont [4/16] %v176, 128
        %209 = vxpose.xlu0.b32.cont [5/16] %v177, 128
        %210 = vxpose.xlu0.b32.cont [6/16] %v178, 128
        %211 = vxpose.xlu0.b32.cont [7/16] %v179, 128
        %212 = vxpose.xlu0.b32.cont [8/16] %v180, 128
        %213 = vxpose.xlu0.b32.cont [9/16] %v181, 128
        %214 = vxpose.xlu0.b32.cont [10/16] %v182, 128
        %215 = vxpose.xlu0.b32.cont [11/16] %v183, 128
        %216 = vxpose.xlu0.b32.cont [12/16] %v184, 128
        %217 = vxpose.xlu0.b32.cont [13/16] %v185, 128
        %218 = vxpose.xlu0.b32.cont [14/16] %v186, 128
        %219 = vxpose.xlu0.b32.cont [15/16] %v187, 128
        %220 = vxpose.xlu0.b32.end [16/16] %v188, 128
        %v221 = vpop.trf.xlu0
        %v222 = vpop.trf.xlu0
        %v223 = vpop.trf.xlu0
        %v224 = vpop.trf.xlu0
        %v225 = vpop.trf.xlu0
        %v226 = vpop.trf.xlu0
        %v227 = vpop.trf.xlu0
        %v228 = vpop.trf.xlu0
        %v229 = vpop.trf.xlu0
        %v230 = vpop.trf.xlu0
        %v231 = vpop.trf.xlu0
        %v232 = vpop.trf.xlu0
        %v233 = vpop.trf.xlu0
        %v234 = vpop.trf.xlu0
        %v235 = vpop.trf.xlu0
        %v236 = vpop.trf.xlu0
        %237 = vxpose.xlu0.b32.start [1/16] %v189, 128
        %238 = vxpose.xlu0.b32.cont [2/16] %v190, 128
        %239 = vxpose.xlu0.b32.cont [3/16] %v191, 128
        %240 = vxpose.xlu0.b32.cont [4/16] %v192, 128
        %241 = vxpose.xlu0.b32.cont [5/16] %v193, 128
        %242 = vxpose.xlu0.b32.cont [6/16] %v194, 128
        %243 = vxpose.xlu0.b32.cont [7/16] %v195, 128
        %244 = vxpose.xlu0.b32.cont [8/16] %v196, 128
        %245 = vxpose.xlu0.b32.cont [9/16] %v197, 128
        %246 = vxpose.xlu0.b32.cont [10/16] %v198, 128
        %247 = vxpose.xlu0.b32.cont [11/16] %v199, 128
        %248 = vxpose.xlu0.b32.cont [12/16] %v200, 128
        %249 = vxpose.xlu0.b32.cont [13/16] %v201, 128
        %250 = vxpose.xlu0.b32.cont [14/16] %v202, 128
        %251 = vxpose.xlu0.b32.cont [15/16] %v203, 128
        %252 = vxpose.xlu0.b32.end [16/16] %v204, 128
        %v253 = vpop.trf.xlu0
        %v254 = vpop.trf.xlu0
        %v255 = vpop.trf.xlu0
        %v256 = vpop.trf.xlu0
        %v257 = vpop.trf.xlu0
        %v258 = vpop.trf.xlu0
        %v259 = vpop.trf.xlu0
        %v260 = vpop.trf.xlu0
        %v261 = vpop.trf.xlu0
        %v262 = vpop.trf.xlu0
        %v263 = vpop.trf.xlu0
        %v264 = vpop.trf.xlu0
        %v265 = vpop.trf.xlu0
        %v266 = vpop.trf.xlu0
        %v267 = vpop.trf.xlu0
        %v268 = vpop.trf.xlu0
        %v269 = vmul.f32 %v221, %v221
        %v270 = vmul.f32 %v253, %v253
        %v271 = vmul.f32 %v222, %v222
        %v272 = vmul.f32 %v254, %v254
        %v273 = vmul.f32 %v223, %v223
        %v274 = vmul.f32 %v255, %v255
        %v275 = vmul.f32 %v224, %v224
        %v276 = vmul.f32 %v256, %v256
        %v277 = vadd.f32 %v269, %v271
        %v278 = vadd.f32 %v277, %v273
        %v279 = vadd.f32 %v278, %v275
        %v280 = vrot.slane %v279, 4
        %v281 = vadd.f32 %v279, %v280
        %v282 = vrot.slane %v281, 2
        %v283 = vadd.f32 %v281, %v282
        %v284 = vrot.slane %v283, 1
        %v285 = vadd.f32 %v283, %v284
        %v286 = vadd.f32 %v270, %v272
        %v287 = vadd.f32 %v286, %v274
        %v288 = vadd.f32 %v287, %v276
        %v289 = vrot.slane %v288, 4
        %v290 = vadd.f32 %v288, %v289
        %v291 = vrot.slane %v290, 2
        %v292 = vadd.f32 %v290, %v291
        %v293 = vrot.slane %v292, 1
        %v294 = vadd.f32 %v292, %v293
        %v295 = vmax.f32 %v285, 1e-24
        %v296 = vmax.f32 %v294, 1e-24
        %v297 = vrsqrt.pop %v295
        %v298 = vrsqrt.pop %v296
        %v299 = vmul.f32 %v221, %v297
        %v300 = vmul.f32 %v253, %v298
        %v301 = vmul.f32 %v222, %v297
        %v302 = vmul.f32 %v254, %v298
        %v303 = vmul.f32 %v223, %v297
        %v304 = vmul.f32 %v255, %v298
        %v305 = vmul.f32 %v224, %v297
        %v306 = vmul.f32 %v256, %v298
        %v307 = vpack.c.bf16 %v301, %v299
        %v308 = vpack.c.bf16 %v302, %v300
        %v309 = vpack.c.bf16 %v305, %v303
        %v310 = vpack.c.bf16 %v306, %v304
        %v311 = vld [vmem:[%s1] sm:$0xf]
        %v312 = vld [vmem:[%s1 + $0x4] sm:$0xf]
        %v313 = vld [vmem:[%s1 + $0x8] sm:$0xf]
        %v314 = vld [vmem:[%s1 + $0xc] sm:$0xf]
        %v315 = vld [vmem:[%s1 + $0x10] sm:$0xf]
        %v316 = vld [vmem:[%s1 + $0x14] sm:$0xf]
        %v317 = vld [vmem:[%s1 + $0x18] sm:$0xf]
        %v318 = vld [vmem:[%s1 + $0x1c] sm:$0xf]
        %v319 = vld [vmem:[%s1 + $0x20] sm:$0xf]
        %v320 = vld [vmem:[%s1 + $0x24] sm:$0xf]
        %v321 = vld [vmem:[%s1 + $0x28] sm:$0xf]
        %v322 = vld [vmem:[%s1 + $0x2c] sm:$0xf]
        %v323 = vld [vmem:[%s1 + $0x30] sm:$0xf]
        %v324 = vld [vmem:[%s1 + $0x34] sm:$0xf]
        %v325 = vld [vmem:[%s1 + $0x38] sm:$0x1]
        %v326 = vld [vmem:[%s2] sm:$0xff]
        %v327 = vld [vmem:[%s2 + $0x8] sm:$0xff]
        %v328 = vld [vmem:[%s2 + $0x10] sm:$0xff]
        %v329 = vld [vmem:[%s2 + $0x18] sm:$0xff]
        %v330 = vld [vmem:[%s2 + $0x20] sm:$0xff]
        %v331 = vld [vmem:[%s2 + $0x28] sm:$0xff]
        %v332 = vld [vmem:[%s2 + $0x30] sm:$0xff]
        %v333 = vld [vmem:[%s2 + $0x38] sm:$0xff]
        %v334 = vld [vmem:[%s2 + $0x40] sm:$0xff]
        %v335 = vld [vmem:[%s2 + $0x48] sm:$0xff]
        %v336 = vld [vmem:[%s2 + $0x50] sm:$0xff]
        %v337 = vld [vmem:[%s2 + $0x58] sm:$0xff]
        %v338 = vld [vmem:[%s2 + $0x60] sm:$0xff]
        %v339 = vld [vmem:[%s2 + $0x68] sm:$0xff]
        %v340 = vld [vmem:[%s2 + $0x70] sm:$0x1]
        %342 = vset.pattern.permute.xlu0 0
        %343 = vperm.xlu0 %342, %v326
        %v344 = vpop.permute.xlu0 %343
        %347 = vset.pattern.permute.xlu0 0
        %348 = vperm.xlu0 %347, %v327
        %v349 = vpop.permute.xlu0 %348
        %352 = vset.pattern.permute.xlu0 0
        %353 = vperm.xlu0 %352, %v328
        %v354 = vpop.permute.xlu0 %353
        %357 = vset.pattern.permute.xlu0 0
        %358 = vperm.xlu0 %357, %v329
        %v359 = vpop.permute.xlu0 %358
        %362 = vset.pattern.permute.xlu0 0
        %363 = vperm.xlu0 %362, %v330
        %v364 = vpop.permute.xlu0 %363
        %367 = vset.pattern.permute.xlu0 0
        %368 = vperm.xlu0 %367, %v331
        %v369 = vpop.permute.xlu0 %368
        %372 = vset.pattern.permute.xlu0 0
        %373 = vperm.xlu0 %372, %v332
        %v374 = vpop.permute.xlu0 %373
        %377 = vset.pattern.permute.xlu0 0
        %378 = vperm.xlu0 %377, %v333
        %v379 = vpop.permute.xlu0 %378
        %v389 = vunpack.c.l.b16 %v311
        %v390 = vunpack.c.l.b16 %v312
        %v391 = vunpack.c.l.b16 %v313
        %v392 = vunpack.c.l.b16 %v314
        %v393 = vunpack.c.l.b16 %v315
        %v394 = vunpack.c.l.b16 %v316
        %v395 = vunpack.c.l.b16 %v317
        %v396 = vunpack.c.l.b16 %v318
        %v397 = vpack.c.b16 %v390, %v389
        %v398 = vpack.c.b16 %v392, %v391
        %v399 = vpack.c.b16 %v394, %v393
        %v400 = vpack.c.b16 %v396, %v395
        %vm401 = vcmask 261120
        %v403 = vsel %vm401, %v397, 0
        %v406 = vsel %vm401, %v398, 0
        %v409 = vsel %vm401, %v399, 0
        %v412 = vsel %vm401, %v400, 0
        %414 = vmatprep.subr.bf16.mxu0 0
        %415 = vmatpush1.bf16.msra.mxu0 0
        %416 = vmatprep.subr.bf16.mxu0 0
        %417 = vmatpush1.bf16.msra.mxu0 0
        %418 = vmatprep.subr.bf16.mxu0 0
        %419 = vmatpush1.bf16.msra.mxu0 0
        %420 = vmatprep.subr.bf16.mxu0 0
        %421 = vmatpush1.bf16.msra.mxu0 0
        %422 = vmatprep.subr.bf16.mxu0 0
        %423 = vmatpush1.bf16.msra.mxu0 0
        %424 = vmatprep.subr.bf16.mxu0 0
        %425 = vmatpush1.bf16.msra.mxu0 0
        %426 = vmatprep.subr.bf16.mxu0 %v310
        %427 = vmatpush1.bf16.msra.mxu0 %v309
        %428 = vmatprep.subr.bf16.mxu0 %v308
        %429 = vmatpush1.bf16.msra.mxu0 %v307
        %430 = vmatprep.subr.bf16.mxu0 0
        %431 = vmatpush2.bf16.msra.mxu0 0
        %432 = vmatprep.subr.bf16.mxu0 0
        %433 = vmatpush2.bf16.msra.mxu0 0
        %434 = vmatprep.subr.bf16.mxu0 0
        %435 = vmatpush2.bf16.msra.mxu0 0
        %436 = vmatprep.subr.bf16.mxu0 0
        %437 = vmatpush2.bf16.msra.mxu0 0
        %438 = vmatprep.subr.bf16.mxu0 0
        %439 = vmatpush2.bf16.msra.mxu0 0
        %440 = vmatprep.subr.bf16.mxu0 0
        %441 = vmatpush2.bf16.msra.mxu0 0
        %442 = vmatprep.subr.bf16.mxu0 0
        %443 = vmatpush2.bf16.msra.mxu0 0
        %444 = vmatprep.subr.bf16.mxu0 0
        %445 = vmatpush2.bf16.msra.mxu0 0
        %446 = vmatprep.mubr.bf16.mxu0 0
        %447 = vmatmul.mubr.bf16.gmra.mxu0 %v403
        %v448 = vpop.f32.mrf.mxu0
        %v449 = vadd.f32 %v344, %v448
        %v450 = vpop.f32.mrf.mxu0
        %v451 = vadd.f32 %v344, %v450
        %v452 = vpop.f32.mrf.mxu0
        %v453 = vadd.f32 %v349, %v452
        %v454 = vpop.f32.mrf.mxu0
        %v455 = vadd.f32 %v349, %v454
        %456 = vmatprep.mubr.bf16.mxu0 0
        %457 = vmatmul.mubr.bf16.gmra.mxu0 %v406
        %v458 = vpop.f32.mrf.mxu0
        %v459 = vadd.f32 %v354, %v458
        %v460 = vpop.f32.mrf.mxu0
        %v461 = vadd.f32 %v354, %v460
        %v462 = vpop.f32.mrf.mxu0
        %v463 = vadd.f32 %v359, %v462
        %v464 = vpop.f32.mrf.mxu0
        %v465 = vadd.f32 %v359, %v464
        %466 = vmatprep.mubr.bf16.mxu0 0
        %467 = vmatmul.mubr.bf16.gmra.mxu0 %v409
        %v468 = vpop.f32.mrf.mxu0
        %v469 = vadd.f32 %v364, %v468
        %v470 = vpop.f32.mrf.mxu0
        %v471 = vadd.f32 %v364, %v470
        %v472 = vpop.f32.mrf.mxu0
        %v473 = vadd.f32 %v369, %v472
        %v474 = vpop.f32.mrf.mxu0
        %v475 = vadd.f32 %v369, %v474
        %476 = vmatprep.mubr.bf16.mxu0 0
        %477 = vmatmul.mubr.bf16.gmra.mxu0 %v412
        %v478 = vpop.f32.mrf.mxu0
        %v479 = vadd.f32 %v374, %v478
        %v480 = vpop.f32.mrf.mxu0
        %v481 = vadd.f32 %v374, %v480
        %v482 = vpop.f32.mrf.mxu0
        %v483 = vadd.f32 %v379, %v482
        %v484 = vpop.f32.mrf.mxu0
        %v485 = vadd.f32 %v379, %v484
        %486 = vdwg.mxu0
        %v487 = vmax.f32 %v449, 0.0
        %v488 = vmax.f32 %v451, 0.0
        %v489 = vmax.f32 %v453, 0.0
        %v490 = vmax.f32 %v455, 0.0
        %v491 = vmax.f32 %v459, 0.0
        %v492 = vmax.f32 %v461, 0.0
        %v493 = vmax.f32 %v463, 0.0
        %v494 = vmax.f32 %v465, 0.0
        %v495 = vmax.f32 %v469, 0.0
        %v496 = vmax.f32 %v471, 0.0
        %v497 = vmax.f32 %v473, 0.0
        %v498 = vmax.f32 %v475, 0.0
        %v499 = vmax.f32 %v479, 0.0
        %v500 = vmax.f32 %v481, 0.0
        %v501 = vmax.f32 %v483, 0.0
        %v502 = vmax.f32 %v485, 0.0
        %v503 = vpack.c.bf16 %v489, %v487
        %v504 = vpack.c.bf16 %v490, %v488
        %v505 = vpack.c.bf16 %v493, %v491
        %v506 = vpack.c.bf16 %v494, %v492
        %v507 = vpack.c.bf16 %v497, %v495
        %v508 = vpack.c.bf16 %v498, %v496
        %v509 = vpack.c.bf16 %v501, %v499
        %v510 = vpack.c.bf16 %v502, %v500
        %512 = vset.pattern.permute.xlu0 0
        %513 = vperm.xlu0 %512, %v334
        %v514 = vpop.permute.xlu0 %513
        %517 = vset.pattern.permute.xlu0 0
        %518 = vperm.xlu0 %517, %v335
        %v519 = vpop.permute.xlu0 %518
        %522 = vset.pattern.permute.xlu0 0
        %523 = vperm.xlu0 %522, %v336
        %v524 = vpop.permute.xlu0 %523
        %527 = vset.pattern.permute.xlu0 0
        %528 = vperm.xlu0 %527, %v337
        %v529 = vpop.permute.xlu0 %528
        %v535 = vunpack.c.l.b16 %v319
        %v536 = vunpack.c.l.b16 %v320
        %v537 = vunpack.c.l.b16 %v321
        %v538 = vunpack.c.l.b16 %v322
        %v539 = vpack.c.b16 %v536, %v535
        %v540 = vpack.c.b16 %v538, %v537
        %vm541 = vcmask 523264
        %v543 = vsel %vm541, %v539, 0
        %v546 = vsel %vm541, %v540, 0
        %548 = vmatprep.subr.bf16.mxu0 0
        %549 = vmatpush1.bf16.msra.mxu0 0
        %550 = vmatprep.subr.bf16.mxu0 0
        %551 = vmatpush1.bf16.msra.mxu0 0
        %552 = vmatprep.subr.bf16.mxu0 0
        %553 = vmatpush1.bf16.msra.mxu0 0
        %554 = vmatprep.subr.bf16.mxu0 0
        %555 = vmatpush1.bf16.msra.mxu0 0
        %556 = vmatprep.subr.bf16.mxu0 %v510
        %557 = vmatpush1.bf16.msra.mxu0 %v509
        %558 = vmatprep.subr.bf16.mxu0 %v508
        %559 = vmatpush1.bf16.msra.mxu0 %v507
        %560 = vmatprep.subr.bf16.mxu0 %v506
        %561 = vmatpush1.bf16.msra.mxu0 %v505
        %562 = vmatprep.subr.bf16.mxu0 %v504
        %563 = vmatpush1.bf16.msra.mxu0 %v503
        %564 = vmatprep.subr.bf16.mxu0 0
        %565 = vmatpush2.bf16.msra.mxu0 0
        %566 = vmatprep.subr.bf16.mxu0 0
        %567 = vmatpush2.bf16.msra.mxu0 0
        %568 = vmatprep.subr.bf16.mxu0 0
        %569 = vmatpush2.bf16.msra.mxu0 0
        %570 = vmatprep.subr.bf16.mxu0 0
        %571 = vmatpush2.bf16.msra.mxu0 0
        %572 = vmatprep.subr.bf16.mxu0 0
        %573 = vmatpush2.bf16.msra.mxu0 0
        %574 = vmatprep.subr.bf16.mxu0 0
        %575 = vmatpush2.bf16.msra.mxu0 0
        %576 = vmatprep.subr.bf16.mxu0 0
        %577 = vmatpush2.bf16.msra.mxu0 0
        %578 = vmatprep.subr.bf16.mxu0 0
        %579 = vmatpush2.bf16.msra.mxu0 0
        %580 = vmatprep.mubr.bf16.mxu0 0
        %581 = vmatmul.mubr.bf16.gmra.mxu0 %v543
        %v582 = vpop.f32.mrf.mxu0
        %v583 = vadd.f32 %v514, %v582
        %v584 = vpop.f32.mrf.mxu0
        %v585 = vadd.f32 %v514, %v584
        %v586 = vpop.f32.mrf.mxu0
        %v587 = vadd.f32 %v519, %v586
        %v588 = vpop.f32.mrf.mxu0
        %v589 = vadd.f32 %v519, %v588
        %590 = vmatprep.mubr.bf16.mxu0 0
        %591 = vmatmul.mubr.bf16.gmra.mxu0 %v546
        %v592 = vpop.f32.mrf.mxu0
        %v593 = vadd.f32 %v524, %v592
        %v594 = vpop.f32.mrf.mxu0
        %v595 = vadd.f32 %v524, %v594
        %v596 = vpop.f32.mrf.mxu0
        %v597 = vadd.f32 %v529, %v596
        %v598 = vpop.f32.mrf.mxu0
        %v599 = vadd.f32 %v529, %v598
        %600 = vdwg.mxu0
        %v601 = vmax.f32 %v583, 0.0
        %v602 = vmax.f32 %v585, 0.0
        %v603 = vmax.f32 %v587, 0.0
        %v604 = vmax.f32 %v589, 0.0
        %v605 = vmax.f32 %v593, 0.0
        %v606 = vmax.f32 %v595, 0.0
        %v607 = vmax.f32 %v597, 0.0
        %v608 = vmax.f32 %v599, 0.0
        %v609 = vpack.c.bf16 %v603, %v601
        %v610 = vpack.c.bf16 %v604, %v602
        %v611 = vpack.c.bf16 %v607, %v605
        %v612 = vpack.c.bf16 %v608, %v606
        %614 = vset.pattern.permute.xlu0 0
        %615 = vperm.xlu0 %614, %v338
        %v616 = vpop.permute.xlu0 %615
        %619 = vset.pattern.permute.xlu0 0
        %620 = vperm.xlu0 %619, %v339
        %v621 = vpop.permute.xlu0 %620
        %v625 = vunpack.c.l.b16 %v323
        %v626 = vunpack.c.l.b16 %v324
        %v627 = vpack.c.b16 %v626, %v625
        %v629 = vsel %vm401, %v627, 0
        %631 = vmatprep.subr.bf16.mxu0 0
        %632 = vmatpush1.bf16.msra.mxu0 0
        %633 = vmatprep.subr.bf16.mxu0 0
        %634 = vmatpush1.bf16.msra.mxu0 0
        %635 = vmatprep.subr.bf16.mxu0 0
        %636 = vmatpush1.bf16.msra.mxu0 0
        %637 = vmatprep.subr.bf16.mxu0 0
        %638 = vmatpush1.bf16.msra.mxu0 0
        %639 = vmatprep.subr.bf16.mxu0 0
        %640 = vmatpush1.bf16.msra.mxu0 0
        %641 = vmatprep.subr.bf16.mxu0 0
        %642 = vmatpush1.bf16.msra.mxu0 0
        %643 = vmatprep.subr.bf16.mxu0 %v612
        %644 = vmatpush1.bf16.msra.mxu0 %v611
        %645 = vmatprep.subr.bf16.mxu0 %v610
        %646 = vmatpush1.bf16.msra.mxu0 %v609
        %647 = vmatprep.subr.bf16.mxu0 0
        %648 = vmatpush2.bf16.msra.mxu0 0
        %649 = vmatprep.subr.bf16.mxu0 0
        %650 = vmatpush2.bf16.msra.mxu0 0
        %651 = vmatprep.subr.bf16.mxu0 0
        %652 = vmatpush2.bf16.msra.mxu0 0
        %653 = vmatprep.subr.bf16.mxu0 0
        %654 = vmatpush2.bf16.msra.mxu0 0
        %655 = vmatprep.subr.bf16.mxu0 0
        %656 = vmatpush2.bf16.msra.mxu0 0
        %657 = vmatprep.subr.bf16.mxu0 0
        %658 = vmatpush2.bf16.msra.mxu0 0
        %659 = vmatprep.subr.bf16.mxu0 0
        %660 = vmatpush2.bf16.msra.mxu0 0
        %661 = vmatprep.subr.bf16.mxu0 0
        %662 = vmatpush2.bf16.msra.mxu0 0
        %663 = vmatprep.mubr.bf16.mxu0 0
        %664 = vmatmul.mubr.bf16.gmra.mxu0 %v629
        %v665 = vpop.f32.mrf.mxu0
        %v666 = vadd.f32 %v616, %v665
        %v667 = vpop.f32.mrf.mxu0
        %v668 = vadd.f32 %v616, %v667
        %v669 = vpop.f32.mrf.mxu0
        %v670 = vadd.f32 %v621, %v669
        %v671 = vpop.f32.mrf.mxu0
        %v672 = vadd.f32 %v621, %v671
        %673 = vdwg.mxu0
        %v674 = vmax.f32 %v666, 0.0
        %v675 = vmax.f32 %v668, 0.0
        %v676 = vmax.f32 %v670, 0.0
        %v677 = vmax.f32 %v672, 0.0
        %v678 = vpack.c.bf16 %v676, %v674
        %v679 = vpack.c.bf16 %v677, %v675
        %681 = vset.pattern.permute.xlu0 0
        %682 = vperm.xlu0 %681, %v340
        %v683 = vpop.permute.xlu0 %682
        %vm685 = vcmask 130048
        %v687 = vsel %vm685, %v325, 0
        %689 = vmatprep.subr.bf16.mxu0 0
        %690 = vmatpush1.bf16.msra.mxu0 0
        %691 = vmatprep.subr.bf16.mxu0 0
        %692 = vmatpush1.bf16.msra.mxu0 0
        %693 = vmatprep.subr.bf16.mxu0 0
        %694 = vmatpush1.bf16.msra.mxu0 0
        %695 = vmatprep.subr.bf16.mxu0 0
        %696 = vmatpush1.bf16.msra.mxu0 0
        %697 = vmatprep.subr.bf16.mxu0 0
        %698 = vmatpush1.bf16.msra.mxu0 0
        %699 = vmatprep.subr.bf16.mxu0 0
        %700 = vmatpush1.bf16.msra.mxu0 0
        %701 = vmatprep.subr.bf16.mxu0 0
        %702 = vmatpush1.bf16.msra.mxu0 0
        %703 = vmatprep.subr.bf16.mxu0 %v679
        %704 = vmatpush1.bf16.msra.mxu0 %v678
        %705 = vmatprep.subr.bf16.mxu0 0
        %706 = vmatpush2.bf16.msra.mxu0 0
        %707 = vmatprep.subr.bf16.mxu0 0
        %708 = vmatpush2.bf16.msra.mxu0 0
        %709 = vmatprep.subr.bf16.mxu0 0
        %710 = vmatpush2.bf16.msra.mxu0 0
        %711 = vmatprep.subr.bf16.mxu0 0
        %712 = vmatpush2.bf16.msra.mxu0 0
        %713 = vmatprep.subr.bf16.mxu0 0
        %714 = vmatpush2.bf16.msra.mxu0 0
        %715 = vmatprep.subr.bf16.mxu0 0
        %716 = vmatpush2.bf16.msra.mxu0 0
        %717 = vmatprep.subr.bf16.mxu0 0
        %718 = vmatpush2.bf16.msra.mxu0 0
        %719 = vmatprep.subr.bf16.mxu0 0
        %720 = vmatpush2.bf16.msra.mxu0 0
        %721 = vmatprep.mubr.bf16.mxu0 0
        %722 = vmatmul.mubr.bf16.gmra.mxu0 %v687
        %v723 = vpop.f32.mrf.mxu0
        %v724 = vadd.f32 %v683, %v723
        %v725 = vpop.f32.mrf.mxu0
        %v726 = vadd.f32 %v683, %v725
        %v727 = vpop.f32.mrf.mxu0
        %v728 = vpop.f32.mrf.mxu0
        %729 = vdwg.mxu0
        %v732 = vcombine.low %v724, %v726
        %v734 = vunpack.c.l.s4 1966171168
        %v735 = vunpack.c.0.s8 %v734
        %v736 = vlaneseq
        %v737 = vshrl.u32 %v736, 7
        %v738 = vsub.s32 %v735, %v737
        %v739 = vrot.slane %v732, %v738
        %v741 = vunpack.c.l.s4 1966171168
        %v742 = vunpack.c.0.s8 %v741
        %v743 = vlaneseq
        %v744 = vshrl.u32 %v743, 7
        %v745 = vsub.s32 %v742, %v744
        %v746 = vrot.slane %v739, %v745
        %v748 = vlaneseq
        %vm749 = vcmp.ge.s32.totalorder %v748, 0
        %vm750 = vcmp.lt.s32.totalorder %v748, 256
        %vm751 = vmand %vm749, %vm750
        %752 = vst.msk [vmem:[%s164] sm:$0x3] %vm751, %v746
        %s753 = sand.u32 %s93, 1
        %s754 = scalar_lea.sflag [#allocation3], %s753
        %s755 = sand.u32 %s93, 1
        %s756 = smul.addr %s755, 2
        %s757 = scalar_lea.vmem [#allocation2], %s756
        // Predicated region
        $region33: #{tpu_custom_call.1} parent=31 // pred_check
          %p758 = pneg %p103
        $region34: #{tpu_custom_call.1} parent=31 // pred_check_branch
          %760 = sbr.rel (%p758) target = $region36
        $region35: #{tpu_custom_call.1} parent=31 // pred_region
          %s761 = smul.u32 2, %s17
          %s763 = ssub.s32 32, 32
          %764 = vsyncadd %s754, %s763
          %s765 = smul.addr %s761, 16
          %s766 = scalar_lea.hbm %s3, %s765
          %s768 = sshll.u32 %s757, 4
          %s769 = int_to_ptr.vmem [resolvable:$true] %s768
          %771 = dma.vmem_to_hbm [thread:$0]  %s769, 32, %s766, %s754
        $region36: #{tpu_custom_call.1} parent=31 // pred_fallthru
          _
      $region32: #{tpu_custom_call.1} parent=5 // pred_fallthru
        _
      %p772 = scmp.le.s32.totalorder 2, %s12
      // Predicated region
      $region37: #{tpu_custom_call.1} parent=5 // pred_check
        %p773 = pneg %p772
      $region38: #{tpu_custom_call.1} parent=5 // pred_check_branch
        %775 = sbr.rel (%p773) target = $region40
      $region39: #{tpu_custom_call.1} parent=5 // pred_region
        %s776 = ssub.s32 %s12, 2
        // Predicated region
        $region41: #{tpu_custom_call.1} parent=39 // pred_check
          %p777 = pneg %p109
        $region42: #{tpu_custom_call.1} parent=39 // pred_check_branch
          %779 = sbr.rel (%p777) target = $region44
        $region43: #{tpu_custom_call.1} parent=39 // pred_region
          %s780 = sand.u32 %s94, 1
          %s781 = scalar_lea.sflag [#allocation3], %s780
          %s782 = sand.u32 %s94, 1
          %s783 = smul.addr %s782, 2
          %s784 = scalar_lea.vmem [#allocation2], %s783
          %785 = dma.done %s781, 32
        $region44: #{tpu_custom_call.1} parent=39 // pred_fallthru
          _
      $region40: #{tpu_custom_call.1} parent=5 // pred_fallthru
        _
    $region6: #{tpu_custom_call.1} parent=1 // loop_footer
      %s16 = sadd.s32 1, %s12
    $region7: #{tpu_custom_call.1} parent=1 // loop_footer_branch
      %11 = sbr.rel target = $region3
    $region8: #{tpu_custom_call.1} parent=1 // loop_exit
      _
    %786 = vsyncpa [#allocation3], 1
    %s787 = scalar_lea.sflag [#allocation3], 1
    %788 = vsyncpa %s787, 1

</llo_original>
